<compile_context>
chip_gen: v7x
topology: tpu7x:2x2x1
jax: 0.10.0
libtpu: 0.0.40
codegen_flags: <defaults>
</compile_context>

<pallas_src>
import functools

import jax
import jax.numpy as jnp
from jax import lax
from jax.experimental import pallas as pl
from jax.experimental.pallas import tpu as pltpu


# ----------------------------------------------------------------------------
# Generation-aware VMEM budgeting
# ----------------------------------------------------------------------------
def _physical_vmem_bytes():
    try:
        return int(pltpu.get_tpu_info().vmem_capacity_bytes)
    except Exception:
        return 64 * 1024 * 1024  # conservative (v7x-sized) fallback


def _vmem_limit_bytes():
    phys = _physical_vmem_bytes()
    # v5e/v6e (128 MiB phys) -> 96 MiB scoped limit; v7x (64 MiB phys) -> 48 MiB.
    return int(max(32 * 1024 * 1024, min(phys * 3 // 4, 96 * 1024 * 1024)))


def _choose_s_tile(s_len, fixed_bytes, per_row_bytes, budget):
    """Largest s-tile (multiple of 8, divisor of s_len) whose working set fits."""
    if s_len % 8 != 0:
        return s_len                      # full-extent block is always legal
    for cand in (1024, 512, 256, 128, 64, 32, 16, 8):
        if s_len % cand == 0 and fixed_bytes + cand * per_row_bytes <= budget:
            return cand
    # TODO(synk): for vocabularies so large that w_vocab(bf16) + two (8, V) f32
    # output blocks exceed the per-generation VMEM budget, a vocab-tiled
    # two-pass softmax variant is required; not implemented here.
    return 8


# ----------------------------------------------------------------------------
# Fused Selector kernel: grid over (bsz, s_len tiles), both "parallel"
# ----------------------------------------------------------------------------
def _selector_fused_kernel(v_ref, eps_ref, gum_ref, att_ref, ids_ref,
                           wv_ref, bv_ref, wms_ref, wpi_ref, bpi_ref,
                           vd_ref, probs_ref, slab_ref,
                           *, q_len, latent_dim, inv_tau):
    f32 = jnp.float32
    bf16 = jnp.bfloat16
    ld = latent_dim

    x = v_ref[0]                          # [ts, d_cat4] f32   (v == cat4)
    xb = x.astype(bf16)

    # ---- vocab distribution: softmax(cat3 @ Wv + b).  Wv is zero-padded on
    # the cq rows, so one bf16 dot over the full cat4 contraction suffices.
    logits = jnp.dot(xb, wv_ref[...], preferred_element_type=f32) + bv_ref[...]
    m = jnp.max(logits, axis=-1, keepdims=True)
    e = jnp.exp(logits - m)
    vd = e / jnp.sum(e, axis=-1, keepdims=True)          # exact normalization
    vd_ref[0] = vd

    # ---- latent path: [mu_pre | sigma_pre] from ONE packed dot.
    ms = jnp.dot(xb, wms_ref[...], preferred_element_type=f32)   # [ts, 2*ld]
    mu = jnp.tanh(ms[:, :ld])
    sigma = jnp.exp(jnp.tanh(ms[:, ld:]))
    h = mu + sigma * eps_ref[0]

    # ---- gumbel-softmax estimator.  softmax((g + log pi)/tau) ==
    # softmax((g + logits_pi)/tau) by softmax shift-invariance.
    logits_pi = jnp.dot(h, wpi_ref[...], preferred_element_type=f32) + bpi_ref[...]
    z = (gum_ref[0] + logits_pi) * inv_tau
    m2 = jnp.max(z, axis=-1, keepdims=True)
    e2 = jnp.exp(z - m2)
    est = e2 / jnp.sum(e2, axis=-1, keepdims=True)

    # ---- lane-dense packed store of [h | mu | sigma | est].
    slab_ref[0, :, 0 * ld:1 * ld] = h
    slab_ref[0, :, 1 * ld:2 * ld] = mu
    slab_ref[0, :, 2 * ld:3 * ld] = sigma
    slab_ref[0, :, 3 * ld:] = est

    # ---- word selection (fused; no vocab_dist HBM round-trip):
    #   probs = est0 * (att_q^T @ OH_q) + est1 * (att_c^T @ OH_c) + est2 * vd
    att = att_ref[0]                      # [ts, K], K = q_len + c_len  (f32)
    ids = ids_ref[0]                      # [K, 1] int32
    K = att.shape[1]
    V = vd.shape[1]
    col = lax.broadcasted_iota(jnp.int32, att.shape, 1)
    scale = jnp.where(col < q_len, est[:, 0:1], est[:, 1:2])
    scaled = (att * scale).astype(bf16)   # scale in f32, cast at the MXU
    vocab_col = lax.broadcasted_iota(jnp.int32, (K, V), 1)
    onehot = (ids == vocab_col).astype(bf16)              # 0/1 exact in bf16
    p_att = jnp.dot(scaled, onehot, preferred_element_type=f32)   # [ts, V]
    probs_ref[0] = p_att + est[:, 2:3] * vd


# ----------------------------------------------------------------------------
# Full forward pass (mirrors Selector.forward)
# ----------------------------------------------------------------------------
def selector_forward(params, cq, att_c, att_q, context_c, context_q, decoded,
                     case_ids, question_ids, eps, gumbel, temperature, num_step):
    if num_step == 0:
        raise ValueError("num_step must be nonzero (tau = temperature / num_step)")
    f32 = jnp.float32
    bf16 = jnp.bfloat16

    bsz, s_len, enc2 = context_q.shape
    dec_hid = decoded.shape[2]
    emb = cq.shape[2]
    V = params["w_vocab"].shape[1]
    ld = params["w_mu"].shape[1]
    k = params["w_pi"].shape[1]
    q_len = att_q.shape[1]
    c_len = att_c.shape[1]
    K = q_len + c_len
    d_cat3 = 2 * enc2 + dec_hid
    d_cat4 = d_cat3 + emb
    slab_w = 3 * ld + k
    inv_tau = float(num_step) / float(temperature)

    # v = cat4 is a required module output -> reuse it as the single activation
    # input (cat3/cat4 are never re-materialized for the kernel).
    v = jnp.concatenate([context_q, context_c, decoded, cq], axis=2).astype(f32)

    # Weight prep (done once, outside the kernel): zero-pad Wv over the cq rows
    # so cat4 @ Wv_pad == cat3 @ Wv; pack Wmu|Wsigma along the output axis.
    w_vocab_pad = jnp.concatenate(
        [params["w_vocab"].astype(f32), jnp.zeros((emb, V), f32)], axis=0).astype(bf16)
    w_musig = jnp.concatenate(
        [params["w_mu"], params["w_sigma"]], axis=1).astype(bf16)      # [d_cat4, 2*ld]
    b_v2d = params["b_vocab"].reshape(1, V).astype(f32)
    w_pi = params["w_pi"].astype(f32)
    b_pi2d = params["b_pi"].reshape(1, k).astype(f32)

    # Lane-dense per-token attention layout + int token ids (one-hot maps are
    # built in-register inside the kernel -> no [b, src, V] HBM traffic).
    att_cat = jnp.concatenate(
        [jnp.swapaxes(att_q, 1, 2), jnp.swapaxes(att_c, 1, 2)], axis=2).astype(f32)
    ids_cat = jnp.concatenate(
        [question_ids, case_ids], axis=1).astype(jnp.int32)[:, :, None]   # [bsz,K,1]

    # ---- VMEM accounting: resident weights (x2 conservative), double-buffered
    # per-step blocks, in-kernel temporaries.
    limit = _vmem_limit_bytes()
    fixed = (2 * (d_cat4 * V * 2 + V * 4 + d_cat4 * 2 * ld * 2 + ld * k * 4 + k * 4)
             + 2 * K * V * 2 + (2 << 20))
    row_io = 4 * (d_cat4 + ld + k + K + 2 * V + slab_w)      # pipelined blocks
    row_tmp = 4 * 3 * V + 2 * (d_cat4 + K + V)               # in-kernel temps
    ts = _choose_s_tile(s_len, fixed, 2 * row_io + row_tmp, limit)
    grid = (bsz, s_len // ts)

    def row_spec(feat):
        return pl.BlockSpec((1, ts, feat), lambda b, si: (b, si, 0))

    def const_spec(shape):
        nd = len(shape)
        return pl.BlockSpec(shape, lambda b, si: (0,) * nd)

    kernel = functools.partial(_selector_fused_kernel,
                               q_len=q_len, latent_dim=ld, inv_tau=inv_tau)

    vocab_dist, probs, slab = pl.pallas_call(
        kernel,
        out_shape=(jax.ShapeDtypeStruct((bsz, s_len, V), f32),
                   jax.ShapeDtypeStruct((bsz, s_len, V), f32),
                   jax.ShapeDtypeStruct((bsz, s_len, slab_w), f32)),
        grid=grid,
        in_specs=[
            row_spec(d_cat4),                                 # v (cat4)
            row_spec(ld),                                     # eps
            row_spec(k),                                      # gumbel
            row_spec(K),                                      # att_cat
            pl.BlockSpec((1, K, 1), lambda b, si: (b, 0, 0)),  # token ids
            const_spec(w_vocab_pad.shape), const_spec((1, V)),
            const_spec(w_musig.shape), const_spec((ld, k)), const_spec((1, k)),
        ],
        out_specs=(row_spec(V), row_spec(V), row_spec(slab_w)),
        compiler_params=pltpu.CompilerParams(
            dimension_semantics=("parallel", "parallel"),
            vmem_limit_bytes=limit),
    )(v, eps, gumbel, att_cat, ids_cat,
      w_vocab_pad, b_v2d, w_musig, w_pi, b_pi2d)

    h = slab[..., 0 * ld:1 * ld]
    mu = slab[..., 1 * ld:2 * ld]
    sigma = slab[..., 2 * ld:3 * ld]

    # TODO(synk): torch.distributions.MultivariateNormal has no Pallas
    # equivalent; we return its (mu, sigma) parameters instead of a
    # distribution object.
    h_dist = (mu, sigma)
    return probs, h, v, h_dist, att_c, att_q, vocab_dist


# ----------------------------------------------------------------------------
# Driver
# ----------------------------------------------------------------------------
if __name__ == "__main__":
    key = jax.random.PRNGKey(0)

    # small, self-consistent shapes
    bsz = 2
    s_len = 8            # decoded length
    enc_hid2 = 16        # 2 x encoder_hidden_dim
    dec_hid = 16         # decoder_hidden_dim
    emb_dim = 16         # embedding dim of cq
    latent_dim = 8
    vocab = 32
    c_len = 8
    q_len = 8
    num_dist_word_selected = 3
    temperature_initial = 1.0
    num_step = 1

    d_cat3 = enc_hid2 + enc_hid2 + dec_hid
    d_cat4 = d_cat3 + emb_dim

    keys = jax.random.split(key, 16)

    # deterministic "parameters" (fresh nn.Linear weights in the reference)
    params = {
        "w_vocab": 0.1 * jax.random.normal(keys[0], (d_cat3, vocab), jnp.float32),
        "b_vocab": 0.1 * jax.random.normal(keys[1], (vocab,), jnp.float32),
        "w_mu":    0.1 * jax.random.normal(keys[2], (d_cat4, latent_dim), jnp.float32),
        "w_sigma": 0.1 * jax.random.normal(keys[3], (d_cat4, latent_dim), jnp.float32),
        "w_pi":    0.1 * jax.random.normal(keys[4], (latent_dim, num_dist_word_selected), jnp.float32),
        "b_pi":    0.1 * jax.random.normal(keys[5], (num_dist_word_selected,), jnp.float32),
    }

    # inputs
    context_q = jax.random.normal(keys[6], (bsz, s_len, enc_hid2), jnp.float32)
    context_c = jax.random.normal(keys[7], (bsz, s_len, enc_hid2), jnp.float32)
    decoded = jax.random.normal(keys[8], (bsz, s_len, dec_hid), jnp.float32)
    cq = jax.random.normal(keys[9], (bsz, s_len, emb_dim), jnp.float32)
    att_c = jax.nn.softmax(jax.random.normal(keys[10], (bsz, c_len, s_len), jnp.float32), axis=1)
    att_q = jax.nn.softmax(jax.random.normal(keys[11], (bsz, q_len, s_len), jnp.float32), axis=1)

    # examples['case'] / examples['question'] -> token ids (one-hots are built
    # inside the kernel from these ids)
    case_ids = jax.random.randint(keys[12], (bsz, c_len), 0, vocab)
    question_ids = jax.random.randint(keys[13], (bsz, q_len), 0, vocab)

    # stochastic draws (reparameterized gaussian + gumbel)
    eps = jax.random.normal(keys[14], (bsz, s_len, latent_dim), jnp.float32)
    gumbel = jax.random.gumbel(keys[15], (bsz, s_len, num_dist_word_selected), jnp.float32)

    probs, h, v, h_dist, att_c_o, att_q_o, vocab_dist = selector_forward(
        params, cq, att_c, att_q, context_c, context_q, decoded,
        case_ids, question_ids, eps, gumbel, temperature_initial, num_step)
    jax.block_until_ready((probs, h, v, h_dist, vocab_dist))

    # ---- pure-JAX f32 reference ------------------------------------------
    cat3 = jnp.concatenate([context_q, context_c, decoded], axis=2)
    vd_ref = jax.nn.softmax(cat3 @ params["w_vocab"] + params["b_vocab"], axis=2)
    v_ref = jnp.concatenate([cat3, cq], axis=2)
    mu_ref = jnp.tanh(v_ref @ params["w_mu"])
    sigma_ref = jnp.exp(jnp.tanh(v_ref @ params["w_sigma"]))
    h_ref = mu_ref + sigma_ref * eps
    pi_ref = jax.nn.softmax(h_ref @ params["w_pi"] + params["b_pi"], axis=2)
    tau = temperature_initial / float(num_step)
    est_ref = jax.nn.softmax((gumbel + jnp.log(pi_ref)) / tau, axis=2)
    oh_q = jax.nn.one_hot(question_ids, vocab, dtype=jnp.float32)
    oh_c = jax.nn.one_hot(case_ids, vocab, dtype=jnp.float32)
    pq = jnp.einsum("bqs,bqv->bsv", att_q, oh_q)
    pc = jnp.einsum("bcs,bcv->bsv", att_c, oh_c)
    probs_ref = (est_ref[..., 0:1] * pq + est_ref[..., 1:2] * pc
                 + est_ref[..., 2:3] * vd_ref)

    assert probs.shape == (bsz, s_len, vocab)
    assert h.shape == (bsz, s_len, latent_dim)
    assert v.shape == (bsz, s_len, d_cat4)
    assert vocab_dist.shape == (bsz, s_len, vocab)
    assert bool(jnp.all(jnp.isfinite(probs)))
    assert bool(jnp.all(jnp.isfinite(vocab_dist)))
    # bf16 MXU path -> modest tolerances vs the f32 reference.
    assert bool(jnp.allclose(vocab_dist, vd_ref, atol=2e-2)), "vocab_dist mismatch"
    assert bool(jnp.allclose(probs, probs_ref, atol=2e-2)), "probs mismatch"
    assert bool(jnp.allclose(h, h_ref, atol=5e-2)), "h mismatch"
    assert bool(jnp.allclose(h_dist[0], mu_ref, atol=5e-2)), "mu mismatch"
    assert bool(jnp.allclose(h_dist[1], sigma_ref, atol=5e-2)), "sigma mismatch"
    assert bool(jnp.allclose(v, v_ref)), "v mismatch"
    print("KERNEL_OK")
</pallas_src>

<mosaic_0001>
module attributes {stable_mosaic.version = 11 : i64} {
  func.func @_selector_fused_kernel(%arg0: i32, %arg1: i32, %arg2: memref<1x8x64xf32, #tpu.memory_space<vmem>>, %arg3: memref<1x8x8xf32, #tpu.memory_space<vmem>>, %arg4: memref<1x8x3xf32, #tpu.memory_space<vmem>>, %arg5: memref<1x8x16xf32, #tpu.memory_space<vmem>>, %arg6: memref<1x16x1xi32, #tpu.memory_space<vmem>>, %arg7: memref<64x32xbf16, #tpu.memory_space<vmem>>, %arg8: memref<1x32xf32, #tpu.memory_space<vmem>>, %arg9: memref<64x16xbf16, #tpu.memory_space<vmem>>, %arg10: memref<8x3xf32, #tpu.memory_space<vmem>>, %arg11: memref<1x3xf32, #tpu.memory_space<vmem>>, %arg12: memref<1x8x32xf32, #tpu.memory_space<vmem>>, %arg13: memref<1x8x32xf32, #tpu.memory_space<vmem>>, %arg14: memref<1x8x27xf32, #tpu.memory_space<vmem>>) attributes {dimension_semantics = [#tpu.dimension_semantics<parallel>, #tpu.dimension_semantics<parallel>], iteration_bounds = array<i64: 2, 1>, scalar_prefetch = 0 : i64, scratch_operands = 0 : i64, tpu.core_type = #tpu.core_type<tc>, window_params = [{transform_indices = @transform_0, window_bounds = array<i64: 1, 8, 64>}, {transform_indices = @transform_1, window_bounds = array<i64: 1, 8, 8>}, {transform_indices = @transform_2, window_bounds = array<i64: 1, 8, 3>}, {transform_indices = @transform_3, window_bounds = array<i64: 1, 8, 16>}, {transform_indices = @transform_4, window_bounds = array<i64: 1, 16, 1>}, {pipeline_mode = #tpu.pipeline_mode<synchronous>, transform_indices = @transform_5, window_bounds = array<i64: 64, 32>}, {pipeline_mode = #tpu.pipeline_mode<synchronous>, transform_indices = @transform_6, window_bounds = array<i64: 1, 32>}, {pipeline_mode = #tpu.pipeline_mode<synchronous>, transform_indices = @transform_7, window_bounds = array<i64: 64, 16>}, {pipeline_mode = #tpu.pipeline_mode<synchronous>, transform_indices = @transform_8, window_bounds = array<i64: 8, 3>}, {pipeline_mode = #tpu.pipeline_mode<synchronous>, transform_indices = @transform_9, window_bounds = array<i64: 1, 3>}, {transform_indices = @transform_10, window_bounds = array<i64: 1, 8, 32>}, {transform_indices = @transform_11, window_bounds = array<i64: 1, 8, 32>}, {transform_indices = @transform_12, window_bounds = array<i64: 1, 8, 27>}]} {
    %c0 = arith.constant 0 : index
    %c0_0 = arith.constant 0 : index
    %c0_1 = arith.constant 0 : index
    %0 = vector.load %arg2[%c0, %c0_0, %c0_1] : memref<1x8x64xf32, #tpu.memory_space<vmem>>, vector<1x8x64xf32>
    %1 = vector.shape_cast %0 : vector<1x8x64xf32> to vector<8x64xf32>
    %2 = arith.truncf %1 : vector<8x64xf32> to vector<8x64xbf16>
    %c0_2 = arith.constant 0 : index
    %c0_3 = arith.constant 0 : index
    %3 = vector.load %arg7[%c0_2, %c0_3] : memref<64x32xbf16, #tpu.memory_space<vmem>>, vector<64x32xbf16>
    %cst = arith.constant dense<0.000000e+00> : vector<8x32xf32>
    %4 = tpu.matmul %2, %3, %cst {dimension_numbers = #tpu.dot_dimension_numbers<[1], [0], [0], [1], [0, 0, 1, 1], [], []>} : vector<8x64xbf16>, vector<64x32xbf16>, vector<8x32xf32> -> vector<8x32xf32>
    %c0_4 = arith.constant 0 : index
    %c0_5 = arith.constant 0 : index
    %5 = vector.load %arg8[%c0_4, %c0_5] : memref<1x32xf32, #tpu.memory_space<vmem>>, vector<1x32xf32>
    %6 = vector.broadcast %5 : vector<1x32xf32> to vector<8x32xf32>
    %7 = arith.addf %4, %6 : vector<8x32xf32>
    %cst_6 = arith.constant dense<0xFF800000> : vector<8xf32>
    %8 = vector.multi_reduction <maximumf>, %7, %cst_6 [1] : vector<8x32xf32> to vector<8xf32>
    %9 = vector.shape_cast %8 : vector<8xf32> to vector<8x1xf32>
    %10 = vector.broadcast %9 : vector<8x1xf32> to vector<8x32xf32>
    %11 = arith.subf %7, %10 : vector<8x32xf32>
    %12 = math.exp %11 : vector<8x32xf32>
    %cst_7 = arith.constant dense<0.000000e+00> : vector<8xf32>
    %13 = vector.multi_reduction <add>, %12, %cst_7 [1] : vector<8x32xf32> to vector<8xf32>
    %14 = vector.shape_cast %13 : vector<8xf32> to vector<8x1xf32>
    %15 = vector.broadcast %14 : vector<8x1xf32> to vector<8x32xf32>
    %16 = arith.divf %12, %15 : vector<8x32xf32>
    %c0_8 = arith.constant 0 : index
    %c0_9 = arith.constant 0 : index
    %c0_10 = arith.constant 0 : index
    %17 = vector.load %arg12[%c0_8, %c0_9, %c0_10] : memref<1x8x32xf32, #tpu.memory_space<vmem>>, vector<1x8x32xf32>
    %18 = vector.shape_cast %17 : vector<1x8x32xf32> to vector<8x32xf32>
    %19 = vector.shape_cast %16 : vector<8x32xf32> to vector<1x8x32xf32>
    tpu.vector_store %arg12[%c0_8, %c0_9, %c0_10], %19 {strides = array<i32>} : memref<1x8x32xf32, #tpu.memory_space<vmem>>, vector<1x8x32xf32>,
    %c0_11 = arith.constant 0 : index
    %c0_12 = arith.constant 0 : index
    %20 = vector.load %arg9[%c0_11, %c0_12] : memref<64x16xbf16, #tpu.memory_space<vmem>>, vector<64x16xbf16>
    %cst_13 = arith.constant dense<0.000000e+00> : vector<8x16xf32>
    %21 = tpu.matmul %2, %20, %cst_13 {dimension_numbers = #tpu.dot_dimension_numbers<[1], [0], [0], [1], [0, 0, 1, 1], [], []>} : vector<8x64xbf16>, vector<64x16xbf16>, vector<8x16xf32> -> vector<8x16xf32>
    %22 = vector.extract_strided_slice %21 {offsets = [0, 0], sizes = [8, 8], strides = [1, 1]} : vector<8x16xf32> to vector<8x8xf32>
    %23 = math.tanh %22 : vector<8x8xf32>
    %24 = vector.extract_strided_slice %21 {offsets = [0, 8], sizes = [8, 8], strides = [1, 1]} : vector<8x16xf32> to vector<8x8xf32>
    %25 = math.tanh %24 : vector<8x8xf32>
    %26 = math.exp %25 : vector<8x8xf32>
    %c0_14 = arith.constant 0 : index
    %c0_15 = arith.constant 0 : index
    %c0_16 = arith.constant 0 : index
    %27 = vector.load %arg3[%c0_14, %c0_15, %c0_16] : memref<1x8x8xf32, #tpu.memory_space<vmem>>, vector<1x8x8xf32>
    %28 = vector.shape_cast %27 : vector<1x8x8xf32> to vector<8x8xf32>
    %29 = arith.mulf %26, %28 : vector<8x8xf32>
    %30 = arith.addf %23, %29 : vector<8x8xf32>
    %c0_17 = arith.constant 0 : index
    %c0_18 = arith.constant 0 : index
    %31 = vector.load %arg10[%c0_17, %c0_18] : memref<8x3xf32, #tpu.memory_space<vmem>>, vector<8x3xf32>
    %cst_19 = arith.constant dense<0.000000e+00> : vector<8x3xf32>
    %32 = tpu.matmul %30, %31, %cst_19 {dimension_numbers = #tpu.dot_dimension_numbers<[1], [0], [0], [1], [0, 0, 1, 1], [], []>} : vector<8x8xf32>, vector<8x3xf32>, vector<8x3xf32> -> vector<8x3xf32>
    %c0_20 = arith.constant 0 : index
    %c0_21 = arith.constant 0 : index
    %33 = vector.load %arg11[%c0_20, %c0_21] : memref<1x3xf32, #tpu.memory_space<vmem>>, vector<1x3xf32>
    %34 = vector.broadcast %33 : vector<1x3xf32> to vector<8x3xf32>
    %35 = arith.addf %32, %34 : vector<8x3xf32>
    %c0_22 = arith.constant 0 : index
    %c0_23 = arith.constant 0 : index
    %c0_24 = arith.constant 0 : index
    %36 = vector.load %arg4[%c0_22, %c0_23, %c0_24] : memref<1x8x3xf32, #tpu.memory_space<vmem>>, vector<1x8x3xf32>
    %37 = vector.shape_cast %36 : vector<1x8x3xf32> to vector<8x3xf32>
    %38 = arith.addf %37, %35 : vector<8x3xf32>
    %cst_25 = arith.constant 1.000000e+00 : f32
    %39 = vector.broadcast %cst_25 : f32 to vector<8x3xf32>
    %40 = arith.mulf %38, %39 : vector<8x3xf32>
    %cst_26 = arith.constant dense<0xFF800000> : vector<8xf32>
    %41 = vector.multi_reduction <maximumf>, %40, %cst_26 [1] : vector<8x3xf32> to vector<8xf32>
    %42 = vector.shape_cast %41 : vector<8xf32> to vector<8x1xf32>
    %43 = vector.broadcast %42 : vector<8x1xf32> to vector<8x3xf32>
    %44 = arith.subf %40, %43 : vector<8x3xf32>
    %45 = math.exp %44 : vector<8x3xf32>
    %cst_27 = arith.constant dense<0.000000e+00> : vector<8xf32>
    %46 = vector.multi_reduction <add>, %45, %cst_27 [1] : vector<8x3xf32> to vector<8xf32>
    %47 = vector.shape_cast %46 : vector<8xf32> to vector<8x1xf32>
    %48 = vector.broadcast %47 : vector<8x1xf32> to vector<8x3xf32>
    %49 = arith.divf %45, %48 : vector<8x3xf32>
    %c0_28 = arith.constant 0 : index
    %c0_29 = arith.constant 0 : index
    %c0_30 = arith.constant 0 : index
    %50 = vector.load %arg14[%c0_28, %c0_29, %c0_30] : memref<1x8x27xf32, #tpu.memory_space<vmem>>, vector<1x8x8xf32>
    %51 = vector.shape_cast %50 : vector<1x8x8xf32> to vector<8x8xf32>
    %52 = vector.shape_cast %30 : vector<8x8xf32> to vector<1x8x8xf32>
    tpu.vector_store %arg14[%c0_28, %c0_29, %c0_30], %52 {strides = array<i32>} : memref<1x8x27xf32, #tpu.memory_space<vmem>>, vector<1x8x8xf32>,
    %c0_31 = arith.constant 0 : index
    %c0_32 = arith.constant 0 : index
    %c8 = arith.constant 8 : index
    %53 = vector.load %arg14[%c0_31, %c0_32, %c8] : memref<1x8x27xf32, #tpu.memory_space<vmem>>, vector<1x8x8xf32>
    %54 = vector.shape_cast %53 : vector<1x8x8xf32> to vector<8x8xf32>
    %55 = vector.shape_cast %23 : vector<8x8xf32> to vector<1x8x8xf32>
    tpu.vector_store %arg14[%c0_31, %c0_32, %c8], %55 {strides = array<i32>} : memref<1x8x27xf32, #tpu.memory_space<vmem>>, vector<1x8x8xf32>,
    %c0_33 = arith.constant 0 : index
    %c0_34 = arith.constant 0 : index
    %c16 = arith.constant 16 : index
    %56 = vector.load %arg14[%c0_33, %c0_34, %c16] : memref<1x8x27xf32, #tpu.memory_space<vmem>>, vector<1x8x8xf32>
    %57 = vector.shape_cast %56 : vector<1x8x8xf32> to vector<8x8xf32>
    %58 = vector.shape_cast %26 : vector<8x8xf32> to vector<1x8x8xf32>
    tpu.vector_store %arg14[%c0_33, %c0_34, %c16], %58 {strides = array<i32>} : memref<1x8x27xf32, #tpu.memory_space<vmem>>, vector<1x8x8xf32>,
    %c0_35 = arith.constant 0 : index
    %c0_36 = arith.constant 0 : index
    %c24 = arith.constant 24 : index
    %59 = vector.load %arg14[%c0_35, %c0_36, %c24] : memref<1x8x27xf32, #tpu.memory_space<vmem>>, vector<1x8x3xf32>
    %60 = vector.shape_cast %59 : vector<1x8x3xf32> to vector<8x3xf32>
    %61 = vector.shape_cast %49 : vector<8x3xf32> to vector<1x8x3xf32>
    tpu.vector_store %arg14[%c0_35, %c0_36, %c24], %61 {strides = array<i32>} : memref<1x8x27xf32, #tpu.memory_space<vmem>>, vector<1x8x3xf32>,
    %c0_37 = arith.constant 0 : index
    %c0_38 = arith.constant 0 : index
    %c0_39 = arith.constant 0 : index
    %62 = vector.load %arg5[%c0_37, %c0_38, %c0_39] : memref<1x8x16xf32, #tpu.memory_space<vmem>>, vector<1x8x16xf32>
    %63 = vector.shape_cast %62 : vector<1x8x16xf32> to vector<8x16xf32>
    %c0_40 = arith.constant 0 : index
    %c0_41 = arith.constant 0 : index
    %c0_42 = arith.constant 0 : index
    %64 = vector.load %arg6[%c0_40, %c0_41, %c0_42] : memref<1x16x1xi32, #tpu.memory_space<vmem>>, vector<1x16x1xi32>
    %65 = vector.shape_cast %64 : vector<1x16x1xi32> to vector<16x1xi32>
    %66 = tpu.iota {dimensions = array<i32: 1>} : vector<8x16xi32>
    %c8_i32 = arith.constant 8 : i32
    %67 = vector.broadcast %c8_i32 : i32 to vector<8x16xi32>
    %68 = arith.cmpi slt, %66, %67 : vector<8x16xi32>
    %69 = vector.extract_strided_slice %49 {offsets = [0, 0], sizes = [8, 1], strides = [1, 1]} : vector<8x3xf32> to vector<8x1xf32>
    %70 = vector.extract_strided_slice %49 {offsets = [0, 1], sizes = [8, 1], strides = [1, 1]} : vector<8x3xf32> to vector<8x1xf32>
    %71 = vector.shape_cast %69 : vector<8x1xf32> to vector<8x1xf32>
    %72 = vector.broadcast %71 : vector<8x1xf32> to vector<8x16xf32>
    %73 = vector.shape_cast %70 : vector<8x1xf32> to vector<8x1xf32>
    %74 = vector.broadcast %73 : vector<8x1xf32> to vector<8x16xf32>
    %75 = arith.select %68, %72, %74 : vector<8x16xi1>, vector<8x16xf32>
    %76 = arith.mulf %63, %75 : vector<8x16xf32>
    %77 = arith.truncf %76 : vector<8x16xf32> to vector<8x16xbf16>
    %78 = tpu.iota {dimensions = array<i32: 1>} : vector<16x32xi32>
    %79 = vector.broadcast %65 : vector<16x1xi32> to vector<16x32xi32>
    %80 = arith.cmpi eq, %79, %78 : vector<16x32xi32>
    %81 = arith.extui %80 : vector<16x32xi1> to vector<16x32xi32>
    %82 = arith.sitofp %81 : vector<16x32xi32> to vector<16x32xf32>
    %83 = arith.truncf %82 : vector<16x32xf32> to vector<16x32xbf16>
    %cst_43 = arith.constant dense<0.000000e+00> : vector<8x32xf32>
    %84 = tpu.matmul %77, %83, %cst_43 {dimension_numbers = #tpu.dot_dimension_numbers<[1], [0], [0], [1], [0, 0, 1, 1], [], []>} : vector<8x16xbf16>, vector<16x32xbf16>, vector<8x32xf32> -> vector<8x32xf32>
    %85 = vector.extract_strided_slice %49 {offsets = [0, 2], sizes = [8, 1], strides = [1, 1]} : vector<8x3xf32> to vector<8x1xf32>
    %86 = vector.broadcast %85 : vector<8x1xf32> to vector<8x32xf32>
    %87 = arith.mulf %86, %16 : vector<8x32xf32>
    %88 = arith.addf %84, %87 : vector<8x32xf32>
    %c0_44 = arith.constant 0 : index
    %c0_45 = arith.constant 0 : index
    %c0_46 = arith.constant 0 : index
    %89 = vector.load %arg13[%c0_44, %c0_45, %c0_46] : memref<1x8x32xf32, #tpu.memory_space<vmem>>, vector<1x8x32xf32>
    %90 = vector.shape_cast %89 : vector<1x8x32xf32> to vector<8x32xf32>
    %91 = vector.shape_cast %88 : vector<8x32xf32> to vector<1x8x32xf32>
    tpu.vector_store %arg13[%c0_44, %c0_45, %c0_46], %91 {strides = array<i32>} : memref<1x8x32xf32, #tpu.memory_space<vmem>>, vector<1x8x32xf32>,
    return
  }
  func.func @transform_0(%arg0: i32, %arg1: i32) -> (i32, i32, i32) {
    %c0_i32 = arith.constant 0 : i32
    %c0_i32_0 = arith.constant 0 : i32
    return %arg0, %arg1, %c0_i32 : i32, i32, i32
  }
  func.func @transform_1(%arg0: i32, %arg1: i32) -> (i32, i32, i32) {
    %c0_i32 = arith.constant 0 : i32
    %c0_i32_0 = arith.constant 0 : i32
    return %arg0, %arg1, %c0_i32 : i32, i32, i32
  }
  func.func @transform_2(%arg0: i32, %arg1: i32) -> (i32, i32, i32) {
    %c0_i32 = arith.constant 0 : i32
    %c0_i32_0 = arith.constant 0 : i32
    return %arg0, %arg1, %c0_i32 : i32, i32, i32
  }
  func.func @transform_3(%arg0: i32, %arg1: i32) -> (i32, i32, i32) {
    %c0_i32 = arith.constant 0 : i32
    %c0_i32_0 = arith.constant 0 : i32
    return %arg0, %arg1, %c0_i32 : i32, i32, i32
  }
  func.func @transform_4(%arg0: i32, %arg1: i32) -> (i32, i32, i32) {
    %c0_i32 = arith.constant 0 : i32
    %c0_i32_0 = arith.constant 0 : i32
    %c0_i32_1 = arith.constant 0 : i32
    return %arg0, %c0_i32, %c0_i32_0 : i32, i32, i32
  }
  func.func @transform_5(%arg0: i32, %arg1: i32) -> (i32, i32) {
    %c0_i32 = arith.constant 0 : i32
    %c0_i32_0 = arith.constant 0 : i32
    %c0_i32_1 = arith.constant 0 : i32
    return %c0_i32, %c0_i32_0 : i32, i32
  }
  func.func @transform_6(%arg0: i32, %arg1: i32) -> (i32, i32) {
    %c0_i32 = arith.constant 0 : i32
    %c0_i32_0 = arith.constant 0 : i32
    %c0_i32_1 = arith.constant 0 : i32
    return %c0_i32, %c0_i32_0 : i32, i32
  }
  func.func @transform_7(%arg0: i32, %arg1: i32) -> (i32, i32) {
    %c0_i32 = arith.constant 0 : i32
    %c0_i32_0 = arith.constant 0 : i32
    %c0_i32_1 = arith.constant 0 : i32
    return %c0_i32, %c0_i32_0 : i32, i32
  }
  func.func @transform_8(%arg0: i32, %arg1: i32) -> (i32, i32) {
    %c0_i32 = arith.constant 0 : i32
    %c0_i32_0 = arith.constant 0 : i32
    %c0_i32_1 = arith.constant 0 : i32
    return %c0_i32, %c0_i32_0 : i32, i32
  }
  func.func @transform_9(%arg0: i32, %arg1: i32) -> (i32, i32) {
    %c0_i32 = arith.constant 0 : i32
    %c0_i32_0 = arith.constant 0 : i32
    %c0_i32_1 = arith.constant 0 : i32
    return %c0_i32, %c0_i32_0 : i32, i32
  }
  func.func @transform_10(%arg0: i32, %arg1: i32) -> (i32, i32, i32) {
    %c0_i32 = arith.constant 0 : i32
    %c0_i32_0 = arith.constant 0 : i32
    return %arg0, %arg1, %c0_i32 : i32, i32, i32
  }
  func.func @transform_11(%arg0: i32, %arg1: i32) -> (i32, i32, i32) {
    %c0_i32 = arith.constant 0 : i32
    %c0_i32_0 = arith.constant 0 : i32
    return %arg0, %arg1, %c0_i32 : i32, i32, i32
  }
  func.func @transform_12(%arg0: i32, %arg1: i32) -> (i32, i32, i32) {
    %c0_i32 = arith.constant 0 : i32
    %c0_i32_0 = arith.constant 0 : i32
    return %arg0, %arg1, %c0_i32 : i32, i32, i32
  }
}

</mosaic_0001>

<llo_original>
// kernel: tpu_custom_call.1
$region0: #{tpu_custom_call.1}
  #allocation0 [shape = 'u32[]', space=smem, size = 0x4, offset = 0x4, fixed_abs, tag = 'smem constant byte address 0x4 - core index']
  #allocation1 [shape = 'u32[144,128]{1,0:T(1,128)}', space=vmem, size = 0x12000, scoped, tag = 'internal scratch']
  %s0 = inlined_call_operand.vmem [shape: f32[2,8,64], index: 0, kind: input, shape index: {}]
  %s1 = inlined_call_operand.vmem [shape: f32[2,8,8], index: 1, kind: input, shape index: {}]
  %s2 = inlined_call_operand.vmem [shape: f32[2,8,3], index: 2, kind: input, shape index: {}]
  %s3 = inlined_call_operand.vmem [shape: f32[2,8,16], index: 3, kind: input, shape index: {}]
  %s4 = inlined_call_operand.vmem [shape: s32[2,16,1], index: 4, kind: input, shape index: {}]
  %s5 = inlined_call_operand.vmem [shape: bf16[64,32], index: 5, kind: input, shape index: {}]
  %s6 = inlined_call_operand.vmem [shape: f32[1,32], index: 6, kind: input, shape index: {}]
  %s7 = inlined_call_operand.vmem [shape: bf16[64,16], index: 7, kind: input, shape index: {}]
  %s8 = inlined_call_operand.vmem [shape: f32[8,3], index: 8, kind: input, shape index: {}]
  %s9 = inlined_call_operand.vmem [shape: f32[1,3], index: 9, kind: input, shape index: {}]
  %s10 = inlined_call_operand.hbm [shape: f32[2,8,32], index: 10, kind: output, shape index: {0}]
  %s11 = inlined_call_operand.hbm [shape: f32[2,8,32], index: 11, kind: output, shape index: {1}]
  %s12 = inlined_call_operand.hbm [shape: f32[2,8,27], index: 12, kind: output, shape index: {2}]
  %13 = xla_tuple %s10, %s11, %s12
  %s14 = sld [smem:[#allocation0]]
  $region89: #{tpu_custom_call.1} parent=0
    _
  %s16 = ssub.s32 1, %s14
  %s17 = scalar_select 0, %s16, %s14
  $region1: #{tpu_custom_call.1} parent=0
    #allocation2 [shape = 'u8[8192]{0}', space=vmem, size = 0x2000, scoped, tag = 'output window, operand 0']
    #allocation3 [shape = 's32[2]{0}', space=sflag, size = 0x8, scoped, tag = 'scoped memory for tpu_custom_call.1']
    #allocation4 [shape = 'u8[8192]{0}', space=vmem, size = 0x2000, scoped, tag = 'output window, operand 1']
    #allocation5 [shape = 's32[2]{0}', space=sflag, size = 0x8, scoped, tag = 'scoped memory for tpu_custom_call.1']
    #allocation6 [shape = 'u8[8192]{0}', space=vmem, size = 0x2000, scoped, tag = 'output window, operand 2']
    %18 = vsyncpa [#allocation3], 0
    %s19 = scalar_lea.sflag [#allocation3], 1
    %20 = vsyncpa %s19, 0
    %21 = vsyncpa [#allocation5], 0
    %s22 = scalar_lea.sflag [#allocation5], 1
    %23 = vsyncpa %s22, 0
    loop: start=0, step=1, limit=4
    $region2: #{tpu_custom_call.1} parent=1 // loop_pre_header
      _
    $region3: #{tpu_custom_call.1} parent=1 // loop_header
      %s25 = sphi 0, %s29
      %p26 = scmp.ge.s32.totalorder %s25, 4
      %s32 = sphi 0, %s44
      %s33 = sphi 0, %s40
      %s34 = sphi 0, %s32
      %s35 = sphi 0, %s33
      %s36 = sphi 0, %s34
      %s37 = sphi 0, %s35
      %s49 = sphi 0, %s51
      %s52 = sphi 0, %s49
      %s53 = sphi 0, %s52
      %s69 = sphi 0, %s53
      %s77 = sphi 0, %s79
      %s80 = sphi 0, %s77
      %s81 = sphi 0, %s80
      %s97 = sphi 0, %s81
      %s105 = sphi 0, %s107
      %s108 = sphi 0, %s105
      %s109 = sphi 0, %s108
      %s125 = sphi 0, %s109
      %s133 = sphi 0, %s135
      %s136 = sphi 0, %s133
      %s137 = sphi 0, %s136
      %s153 = sphi 0, %s137
      %s159 = sphi 0, %s161
      %s162 = sphi 0, %s159
      %s163 = sphi 0, %s162
      %s179 = sphi 0, %s163
      %s183 = sphi 0, %s183
      %s185 = sphi 0, %s183
      %s186 = sphi 0, %s185
      %s200 = sphi 0, %s186
      %s204 = sphi 0, %s204
      %s206 = sphi 0, %s204
      %s207 = sphi 0, %s206
      %s221 = sphi 0, %s207
      %s225 = sphi 0, %s225
      %s227 = sphi 0, %s225
      %s228 = sphi 0, %s227
      %s242 = sphi 0, %s228
      %s246 = sphi 0, %s246
      %s248 = sphi 0, %s246
      %s249 = sphi 0, %s248
      %s263 = sphi 0, %s249
      %s267 = sphi 0, %s267
      %s269 = sphi 0, %s267
      %s270 = sphi 0, %s269
      %s284 = sphi 0, %s270
      %s292 = sphi 0, %s294
      %s295 = sphi 0, %s292
      %s296 = sphi 0, %s295
      %s312 = sphi 0, %s296
      %s320 = sphi 0, %s322
      %s323 = sphi 0, %s320
      %s324 = sphi 0, %s323
      %s340 = sphi 0, %s324
      %s348 = sphi 0, %s350
      %s351 = sphi 0, %s348
      %s352 = sphi 0, %s351
      %s368 = sphi 0, %s352
    $region4: #{tpu_custom_call.1} parent=1 // loop_header_branch
      %28 = sbr.rel (%p26) target = $region8
    $region5: #{tpu_custom_call.1} parent=1 // loop_body
      %s30 = ssub.s32 %s25, 1
      %s31 = ssub.s32 %s25, 2
      %s38 = sadd.s32 1, %s33
      %p39 = scmp.ge.s32.totalorder %s38, 1
      %s40 = scalar_select %p39, 0, %s38
      %s41 = sadd.s32 1, %s32
      %s42 = scalar_select %p39, %s41, %s32
      %p43 = scmp.ge.s32.totalorder %s42, 2
      %s44 = scalar_select %p43, 0, %s42
      %s45 = ssub.s32 %s32, %s44
      %s46 = ssub.s32 %s33, %s40
      %s47 = sor.u32 %s45, %s46
      %p48 = scmp.eq.s32.totalorder %s47, 0
      %s50 = sadd.s32 %s49, 1
      %s51 = scalar_select %p48, %s49, %s50
      %p54 = pneg %p48
      %p55 = scmp.eq.s32.totalorder %s25, 1
      %p56 = por %p54, %p55
      %p57 = scmp.ne.s32.totalorder %s49, %s52
      %p58 = scmp.eq.s32.totalorder %s25, 0
      %p59 = por %p57, %p58
      %p60 = scmp.ne.s32.totalorder %s49, %s52
      %p61 = scmp.eq.s32.totalorder %s30, 1
      %p62 = por %p60, %p61
      %p63 = scmp.ne.s32.totalorder %s52, %s53
      %p64 = scmp.eq.s32.totalorder %s30, 0
      %p65 = por %p63, %p64
      %p66 = scmp.ne.s32.totalorder %s52, %s53
      %p67 = scmp.eq.s32.totalorder %s31, 1
      %p68 = por %p66, %p67
      %p70 = scmp.ne.s32.totalorder %s53, %s69
      %p71 = scmp.eq.s32.totalorder %s31, 0
      %p72 = por %p70, %p71
      %s73 = ssub.s32 %s32, %s44
      %s74 = ssub.s32 %s33, %s40
      %s75 = sor.u32 %s73, %s74
      %p76 = scmp.eq.s32.totalorder %s75, 0
      %s78 = sadd.s32 %s77, 1
      %s79 = scalar_select %p76, %s77, %s78
      %p82 = pneg %p76
      %p83 = scmp.eq.s32.totalorder %s25, 1
      %p84 = por %p82, %p83
      %p85 = scmp.ne.s32.totalorder %s77, %s80
      %p86 = scmp.eq.s32.totalorder %s25, 0
      %p87 = por %p85, %p86
      %p88 = scmp.ne.s32.totalorder %s77, %s80
      %p89 = scmp.eq.s32.totalorder %s30, 1
      %p90 = por %p88, %p89
      %p91 = scmp.ne.s32.totalorder %s80, %s81
      %p92 = scmp.eq.s32.totalorder %s30, 0
      %p93 = por %p91, %p92
      %p94 = scmp.ne.s32.totalorder %s80, %s81
      %p95 = scmp.eq.s32.totalorder %s31, 1
      %p96 = por %p94, %p95
      %p98 = scmp.ne.s32.totalorder %s81, %s97
      %p99 = scmp.eq.s32.totalorder %s31, 0
      %p100 = por %p98, %p99
      %s101 = ssub.s32 %s32, %s44
      %s102 = ssub.s32 %s33, %s40
      %s103 = sor.u32 %s101, %s102
      %p104 = scmp.eq.s32.totalorder %s103, 0
      %s106 = sadd.s32 %s105, 1
      %s107 = scalar_select %p104, %s105, %s106
      %p110 = pneg %p104
      %p111 = scmp.eq.s32.totalorder %s25, 1
      %p112 = por %p110, %p111
      %p113 = scmp.ne.s32.totalorder %s105, %s108
      %p114 = scmp.eq.s32.totalorder %s25, 0
      %p115 = por %p113, %p114
      %p116 = scmp.ne.s32.totalorder %s105, %s108
      %p117 = scmp.eq.s32.totalorder %s30, 1
      %p118 = por %p116, %p117
      %p119 = scmp.ne.s32.totalorder %s108, %s109
      %p120 = scmp.eq.s32.totalorder %s30, 0
      %p121 = por %p119, %p120
      %p122 = scmp.ne.s32.totalorder %s108, %s109
      %p123 = scmp.eq.s32.totalorder %s31, 1
      %p124 = por %p122, %p123
      %p126 = scmp.ne.s32.totalorder %s109, %s125
      %p127 = scmp.eq.s32.totalorder %s31, 0
      %p128 = por %p126, %p127
      %s129 = ssub.s32 %s32, %s44
      %s130 = ssub.s32 %s33, %s40
      %s131 = sor.u32 %s129, %s130
      %p132 = scmp.eq.s32.totalorder %s131, 0
      %s134 = sadd.s32 %s133, 1
      %s135 = scalar_select %p132, %s133, %s134
      %p138 = pneg %p132
      %p139 = scmp.eq.s32.totalorder %s25, 1
      %p140 = por %p138, %p139
      %p141 = scmp.ne.s32.totalorder %s133, %s136
      %p142 = scmp.eq.s32.totalorder %s25, 0
      %p143 = por %p141, %p142
      %p144 = scmp.ne.s32.totalorder %s133, %s136
      %p145 = scmp.eq.s32.totalorder %s30, 1
      %p146 = por %p144, %p145
      %p147 = scmp.ne.s32.totalorder %s136, %s137
      %p148 = scmp.eq.s32.totalorder %s30, 0
      %p149 = por %p147, %p148
      %p150 = scmp.ne.s32.totalorder %s136, %s137
      %p151 = scmp.eq.s32.totalorder %s31, 1
      %p152 = por %p150, %p151
      %p154 = scmp.ne.s32.totalorder %s137, %s153
      %p155 = scmp.eq.s32.totalorder %s31, 0
      %p156 = por %p154, %p155
      %s157 = ssub.s32 %s32, %s44
      %p158 = scmp.eq.s32.totalorder %s157, 0
      %s160 = sadd.s32 %s159, 1
      %s161 = scalar_select %p158, %s159, %s160
      %p164 = pneg %p158
      %p165 = scmp.eq.s32.totalorder %s25, 1
      %p166 = por %p164, %p165
      %p167 = scmp.ne.s32.totalorder %s159, %s162
      %p168 = scmp.eq.s32.totalorder %s25, 0
      %p169 = por %p167, %p168
      %p170 = scmp.ne.s32.totalorder %s159, %s162
      %p171 = scmp.eq.s32.totalorder %s30, 1
      %p172 = por %p170, %p171
      %p173 = scmp.ne.s32.totalorder %s162, %s163
      %p174 = scmp.eq.s32.totalorder %s30, 0
      %p175 = por %p173, %p174
      %p176 = scmp.ne.s32.totalorder %s162, %s163
      %p177 = scmp.eq.s32.totalorder %s31, 1
      %p178 = por %p176, %p177
      %p180 = scmp.ne.s32.totalorder %s163, %s179
      %p181 = scmp.eq.s32.totalorder %s31, 0
      %p182 = por %p180, %p181
      %s184 = sadd.s32 %s183, 1
      %p187 = scmp.eq.s32.totalorder %s25, 1
      %p188 = scmp.ne.s32.totalorder %s183, %s185
      %p189 = scmp.eq.s32.totalorder %s25, 0
      %p190 = por %p188, %p189
      %p191 = scmp.ne.s32.totalorder %s183, %s185
      %p192 = scmp.eq.s32.totalorder %s30, 1
      %p193 = por %p191, %p192
      %p194 = scmp.ne.s32.totalorder %s185, %s186
      %p195 = scmp.eq.s32.totalorder %s30, 0
      %p196 = por %p194, %p195
      %p197 = scmp.ne.s32.totalorder %s185, %s186
      %p198 = scmp.eq.s32.totalorder %s31, 1
      %p199 = por %p197, %p198
      %p201 = scmp.ne.s32.totalorder %s186, %s200
      %p202 = scmp.eq.s32.totalorder %s31, 0
      %p203 = por %p201, %p202
      %s205 = sadd.s32 %s204, 1
      %p208 = scmp.eq.s32.totalorder %s25, 1
      %p209 = scmp.ne.s32.totalorder %s204, %s206
      %p210 = scmp.eq.s32.totalorder %s25, 0
      %p211 = por %p209, %p210
      %p212 = scmp.ne.s32.totalorder %s204, %s206
      %p213 = scmp.eq.s32.totalorder %s30, 1
      %p214 = por %p212, %p213
      %p215 = scmp.ne.s32.totalorder %s206, %s207
      %p216 = scmp.eq.s32.totalorder %s30, 0
      %p217 = por %p215, %p216
      %p218 = scmp.ne.s32.totalorder %s206, %s207
      %p219 = scmp.eq.s32.totalorder %s31, 1
      %p220 = por %p218, %p219
      %p222 = scmp.ne.s32.totalorder %s207, %s221
      %p223 = scmp.eq.s32.totalorder %s31, 0
      %p224 = por %p222, %p223
      %s226 = sadd.s32 %s225, 1
      %p229 = scmp.eq.s32.totalorder %s25, 1
      %p230 = scmp.ne.s32.totalorder %s225, %s227
      %p231 = scmp.eq.s32.totalorder %s25, 0
      %p232 = por %p230, %p231
      %p233 = scmp.ne.s32.totalorder %s225, %s227
      %p234 = scmp.eq.s32.totalorder %s30, 1
      %p235 = por %p233, %p234
      %p236 = scmp.ne.s32.totalorder %s227, %s228
      %p237 = scmp.eq.s32.totalorder %s30, 0
      %p238 = por %p236, %p237
      %p239 = scmp.ne.s32.totalorder %s227, %s228
      %p240 = scmp.eq.s32.totalorder %s31, 1
      %p241 = por %p239, %p240
      %p243 = scmp.ne.s32.totalorder %s228, %s242
      %p244 = scmp.eq.s32.totalorder %s31, 0
      %p245 = por %p243, %p244
      %s247 = sadd.s32 %s246, 1
      %p250 = scmp.eq.s32.totalorder %s25, 1
      %p251 = scmp.ne.s32.totalorder %s246, %s248
      %p252 = scmp.eq.s32.totalorder %s25, 0
      %p253 = por %p251, %p252
      %p254 = scmp.ne.s32.totalorder %s246, %s248
      %p255 = scmp.eq.s32.totalorder %s30, 1
      %p256 = por %p254, %p255
      %p257 = scmp.ne.s32.totalorder %s248, %s249
      %p258 = scmp.eq.s32.totalorder %s30, 0
      %p259 = por %p257, %p258
      %p260 = scmp.ne.s32.totalorder %s248, %s249
      %p261 = scmp.eq.s32.totalorder %s31, 1
      %p262 = por %p260, %p261
      %p264 = scmp.ne.s32.totalorder %s249, %s263
      %p265 = scmp.eq.s32.totalorder %s31, 0
      %p266 = por %p264, %p265
      %s268 = sadd.s32 %s267, 1
      %p271 = scmp.eq.s32.totalorder %s25, 1
      %p272 = scmp.ne.s32.totalorder %s267, %s269
      %p273 = scmp.eq.s32.totalorder %s25, 0
      %p274 = por %p272, %p273
      %p275 = scmp.ne.s32.totalorder %s267, %s269
      %p276 = scmp.eq.s32.totalorder %s30, 1
      %p277 = por %p275, %p276
      %p278 = scmp.ne.s32.totalorder %s269, %s270
      %p279 = scmp.eq.s32.totalorder %s30, 0
      %p280 = por %p278, %p279
      %p281 = scmp.ne.s32.totalorder %s269, %s270
      %p282 = scmp.eq.s32.totalorder %s31, 1
      %p283 = por %p281, %p282
      %p285 = scmp.ne.s32.totalorder %s270, %s284
      %p286 = scmp.eq.s32.totalorder %s31, 0
      %p287 = por %p285, %p286
      %s288 = ssub.s32 %s32, %s44
      %s289 = ssub.s32 %s33, %s40
      %s290 = sor.u32 %s288, %s289
      %p291 = scmp.eq.s32.totalorder %s290, 0
      %s293 = sadd.s32 %s292, 1
      %s294 = scalar_select %p291, %s292, %s293
      %p297 = pneg %p291
      %p298 = scmp.eq.s32.totalorder %s25, 1
      %p299 = por %p297, %p298
      %p300 = scmp.ne.s32.totalorder %s292, %s295
      %p301 = scmp.eq.s32.totalorder %s25, 0
      %p302 = por %p300, %p301
      %p303 = scmp.ne.s32.totalorder %s292, %s295
      %p304 = scmp.eq.s32.totalorder %s30, 1
      %p305 = por %p303, %p304
      %p306 = scmp.ne.s32.totalorder %s295, %s296
      %p307 = scmp.eq.s32.totalorder %s30, 0
      %p308 = por %p306, %p307
      %p309 = scmp.ne.s32.totalorder %s295, %s296
      %p310 = scmp.eq.s32.totalorder %s31, 1
      %p311 = por %p309, %p310
      %p313 = scmp.ne.s32.totalorder %s296, %s312
      %p314 = scmp.eq.s32.totalorder %s31, 0
      %p315 = por %p313, %p314
      %s316 = ssub.s32 %s32, %s44
      %s317 = ssub.s32 %s33, %s40
      %s318 = sor.u32 %s316, %s317
      %p319 = scmp.eq.s32.totalorder %s318, 0
      %s321 = sadd.s32 %s320, 1
      %s322 = scalar_select %p319, %s320, %s321
      %p325 = pneg %p319
      %p326 = scmp.eq.s32.totalorder %s25, 1
      %p327 = por %p325, %p326
      %p328 = scmp.ne.s32.totalorder %s320, %s323
      %p329 = scmp.eq.s32.totalorder %s25, 0
      %p330 = por %p328, %p329
      %p331 = scmp.ne.s32.totalorder %s320, %s323
      %p332 = scmp.eq.s32.totalorder %s30, 1
      %p333 = por %p331, %p332
      %p334 = scmp.ne.s32.totalorder %s323, %s324
      %p335 = scmp.eq.s32.totalorder %s30, 0
      %p336 = por %p334, %p335
      %p337 = scmp.ne.s32.totalorder %s323, %s324
      %p338 = scmp.eq.s32.totalorder %s31, 1
      %p339 = por %p337, %p338
      %p341 = scmp.ne.s32.totalorder %s324, %s340
      %p342 = scmp.eq.s32.totalorder %s31, 0
      %p343 = por %p341, %p342
      %s344 = ssub.s32 %s32, %s44
      %s345 = ssub.s32 %s33, %s40
      %s346 = sor.u32 %s344, %s345
      %p347 = scmp.eq.s32.totalorder %s346, 0
      %s349 = sadd.s32 %s348, 1
      %s350 = scalar_select %p347, %s348, %s349
      %p353 = pneg %p347
      %p354 = scmp.eq.s32.totalorder %s25, 1
      %p355 = por %p353, %p354
      %p356 = scmp.ne.s32.totalorder %s348, %s351
      %p357 = scmp.eq.s32.totalorder %s25, 0
      %p358 = por %p356, %p357
      %p359 = scmp.ne.s32.totalorder %s348, %s351
      %p360 = scmp.eq.s32.totalorder %s30, 1
      %p361 = por %p359, %p360
      %p362 = scmp.ne.s32.totalorder %s351, %s352
      %p363 = scmp.eq.s32.totalorder %s30, 0
      %p364 = por %p362, %p363
      %p365 = scmp.ne.s32.totalorder %s351, %s352
      %p366 = scmp.eq.s32.totalorder %s31, 1
      %p367 = por %p365, %p366
      %p369 = scmp.ne.s32.totalorder %s352, %s368
      %p370 = scmp.eq.s32.totalorder %s31, 0
      %p371 = por %p369, %p370
      %p372 = scmp.le.s32.totalorder 1, %s25
      %p373 = scmp.lt.s32.totalorder %s25, 3
      %p374 = pnand %p372, %p373
      %p375 = pneg %p374
      // Predicated region
      $region9: #{tpu_custom_call.1} parent=5 // pred_check
        _
      $region10: #{tpu_custom_call.1} parent=5 // pred_check_branch
        %377 = sbr.rel (%p374) target = $region12
      $region11: #{tpu_custom_call.1} parent=5 // pred_region
        %s378 = ssub.s32 %s25, 1
        // Predicated region
        $region13: #{tpu_custom_call.1} parent=11 // pred_check
          %p379 = pneg %p196
        $region14: #{tpu_custom_call.1} parent=11 // pred_check_branch
          %381 = sbr.rel (%p379) target = $region16
        $region15: #{tpu_custom_call.1} parent=11 // pred_region
          _
        $region16: #{tpu_custom_call.1} parent=11 // pred_fallthru
          _
        // Predicated region
        $region17: #{tpu_custom_call.1} parent=11 // pred_check
          %p382 = pneg %p217
        $region18: #{tpu_custom_call.1} parent=11 // pred_check_branch
          %384 = sbr.rel (%p382) target = $region20
        $region19: #{tpu_custom_call.1} parent=11 // pred_region
          _
        $region20: #{tpu_custom_call.1} parent=11 // pred_fallthru
          _
        // Predicated region
        $region21: #{tpu_custom_call.1} parent=11 // pred_check
          %p385 = pneg %p238
        $region22: #{tpu_custom_call.1} parent=11 // pred_check_branch
          %387 = sbr.rel (%p385) target = $region24
        $region23: #{tpu_custom_call.1} parent=11 // pred_region
          _
        $region24: #{tpu_custom_call.1} parent=11 // pred_fallthru
          _
        // Predicated region
        $region25: #{tpu_custom_call.1} parent=11 // pred_check
          %p388 = pneg %p259
        $region26: #{tpu_custom_call.1} parent=11 // pred_check_branch
          %390 = sbr.rel (%p388) target = $region28
        $region27: #{tpu_custom_call.1} parent=11 // pred_region
          _
        $region28: #{tpu_custom_call.1} parent=11 // pred_fallthru
          _
        // Predicated region
        $region29: #{tpu_custom_call.1} parent=11 // pred_check
          %p391 = pneg %p280
        $region30: #{tpu_custom_call.1} parent=11 // pred_check_branch
          %393 = sbr.rel (%p391) target = $region32
        $region31: #{tpu_custom_call.1} parent=11 // pred_region
          _
        $region32: #{tpu_custom_call.1} parent=11 // pred_fallthru
          _
      $region12: #{tpu_custom_call.1} parent=5 // pred_fallthru
        _
      %p394 = scmp.lt.s32.totalorder %s25, 2
      // Predicated region
      $region33: #{tpu_custom_call.1} parent=5 // pred_check
        %p395 = pneg %p394
      $region34: #{tpu_custom_call.1} parent=5 // pred_check_branch
        %397 = sbr.rel (%p395) target = $region36
      $region35: #{tpu_custom_call.1} parent=5 // pred_region
        // Predicated region
        $region37: #{tpu_custom_call.1} parent=35 // pred_check
          %p398 = pneg %p59
        $region38: #{tpu_custom_call.1} parent=35 // pred_check_branch
          %400 = sbr.rel (%p398) target = $region40
        $region39: #{tpu_custom_call.1} parent=35 // pred_region
          %p401 = scmp.lt.s32.totalorder %s32, 1
          %s402 = scalar_select %p401, %s32, 1
          %p403 = scmp.lt.s32.totalorder %s33, 0
          %s404 = scalar_select %p403, %s33, 0
          %s405 = sadd.s32 %s404, %s402
          %s406 = smul.addr %s405, 8
          %s407 = scalar_lea.vmem %s0, %s406
        $region40: #{tpu_custom_call.1} parent=35 // pred_fallthru
          _
        // Predicated region
        $region41: #{tpu_custom_call.1} parent=35 // pred_check
          %p408 = pneg %p87
        $region42: #{tpu_custom_call.1} parent=35 // pred_check_branch
          %410 = sbr.rel (%p408) target = $region44
        $region43: #{tpu_custom_call.1} parent=35 // pred_region
          %p411 = scmp.lt.s32.totalorder %s32, 1
          %s412 = scalar_select %p411, %s32, 1
          %p413 = scmp.lt.s32.totalorder %s33, 0
          %s414 = scalar_select %p413, %s33, 0
          %s415 = sadd.s32 %s414, %s412
          %s416 = smul.addr %s415, 8
          %s417 = scalar_lea.vmem %s1, %s416
        $region44: #{tpu_custom_call.1} parent=35 // pred_fallthru
          _
        // Predicated region
        $region45: #{tpu_custom_call.1} parent=35 // pred_check
          %p418 = pneg %p115
        $region46: #{tpu_custom_call.1} parent=35 // pred_check_branch
          %420 = sbr.rel (%p418) target = $region48
        $region47: #{tpu_custom_call.1} parent=35 // pred_region
          %p421 = scmp.lt.s32.totalorder %s32, 1
          %s422 = scalar_select %p421, %s32, 1
          %p423 = scmp.lt.s32.totalorder %s33, 0
          %s424 = scalar_select %p423, %s33, 0
          %s425 = sadd.s32 %s424, %s422
          %s426 = smul.addr %s425, 8
          %s427 = scalar_lea.vmem %s2, %s426
        $region48: #{tpu_custom_call.1} parent=35 // pred_fallthru
          _
        // Predicated region
        $region49: #{tpu_custom_call.1} parent=35 // pred_check
          %p428 = pneg %p143
        $region50: #{tpu_custom_call.1} parent=35 // pred_check_branch
          %430 = sbr.rel (%p428) target = $region52
        $region51: #{tpu_custom_call.1} parent=35 // pred_region
          %p431 = scmp.lt.s32.totalorder %s32, 1
          %s432 = scalar_select %p431, %s32, 1
          %p433 = scmp.lt.s32.totalorder %s33, 0
          %s434 = scalar_select %p433, %s33, 0
          %s435 = sadd.s32 %s434, %s432
          %s436 = smul.addr %s435, 8
          %s437 = scalar_lea.vmem %s3, %s436
        $region52: #{tpu_custom_call.1} parent=35 // pred_fallthru
          _
        // Predicated region
        $region53: #{tpu_custom_call.1} parent=35 // pred_check
          %p438 = pneg %p169
        $region54: #{tpu_custom_call.1} parent=35 // pred_check_branch
          %440 = sbr.rel (%p438) target = $region56
        $region55: #{tpu_custom_call.1} parent=35 // pred_region
          %p441 = scmp.lt.s32.totalorder %s32, 1
          %s442 = scalar_select %p441, %s32, 1
          %s443 = smul.addr %s442, 2
          %s444 = smul.addr %s443, 8
          %s445 = scalar_lea.vmem %s4, %s444
        $region56: #{tpu_custom_call.1} parent=35 // pred_fallthru
          _
      $region36: #{tpu_custom_call.1} parent=5 // pred_fallthru
        _
      %p446 = scmp.le.s32.totalorder 1, %s25
      %p447 = scmp.lt.s32.totalorder %s25, 3
      %p448 = pnand %p446, %p447
      %p449 = pneg %p448
      // Predicated region
      $region57: #{tpu_custom_call.1} parent=5 // pred_check
        _
      $region58: #{tpu_custom_call.1} parent=5 // pred_check_branch
        %451 = sbr.rel (%p448) target = $region60
      $region59: #{tpu_custom_call.1} parent=5 // pred_region
        %s452 = ssub.s32 %s25, 1
        %p453 = scmp.lt.s32.totalorder %s34, 1
        %s454 = scalar_select %p453, %s34, 1
        %p455 = scmp.lt.s32.totalorder %s35, 0
        %s456 = scalar_select %p455, %s35, 0
        %s457 = sadd.s32 %s456, %s454
        %s458 = smul.addr %s457, 8
        %s459 = scalar_lea.vmem %s0, %s458
        %p460 = pneg %p65
        %p461 = pneg %p62
        %p462 = scmp.lt.s32.totalorder %s34, 1
        %s463 = scalar_select %p462, %s34, 1
        %p464 = scmp.lt.s32.totalorder %s35, 0
        %s465 = scalar_select %p464, %s35, 0
        %s466 = sadd.s32 %s465, %s463
        %s467 = smul.addr %s466, 8
        %s468 = scalar_lea.vmem %s1, %s467
        %p469 = pneg %p93
        %p470 = pneg %p90
        %p471 = scmp.lt.s32.totalorder %s34, 1
        %s472 = scalar_select %p471, %s34, 1
        %p473 = scmp.lt.s32.totalorder %s35, 0
        %s474 = scalar_select %p473, %s35, 0
        %s475 = sadd.s32 %s474, %s472
        %s476 = smul.addr %s475, 8
        %s477 = scalar_lea.vmem %s2, %s476
        %p478 = pneg %p121
        %p479 = pneg %p118
        %p480 = scmp.lt.s32.totalorder %s34, 1
        %s481 = scalar_select %p480, %s34, 1
        %p482 = scmp.lt.s32.totalorder %s35, 0
        %s483 = scalar_select %p482, %s35, 0
        %s484 = sadd.s32 %s483, %s481
        %s485 = smul.addr %s484, 8
        %s486 = scalar_lea.vmem %s3, %s485
        %p487 = pneg %p149
        %p488 = pneg %p146
        %p489 = scmp.lt.s32.totalorder %s34, 1
        %s490 = scalar_select %p489, %s34, 1
        %s491 = smul.addr %s490, 2
        %s492 = smul.addr %s491, 8
        %s493 = scalar_lea.vmem %s4, %s492
        %p494 = pneg %p175
        %p495 = pneg %p172
        %p496 = pneg %p196
        %p497 = pneg %p193
        %p498 = pneg %p217
        %p499 = pneg %p214
        %p500 = pneg %p238
        %p501 = pneg %p235
        %p502 = pneg %p259
        %p503 = pneg %p256
        %p504 = pneg %p280
        %p505 = pneg %p277
        %p506 = pneg %p308
        %p507 = pneg %p305
        %s508 = sand.u32 %s295, 1
        %s509 = scalar_lea.sflag [#allocation3], %s508
        %s510 = sand.u32 %s295, 1
        %s511 = smul.addr %s510, 8
        %s512 = scalar_lea.vmem [#allocation2], %s511
        %p513 = pneg %p336
        %p514 = pneg %p333
        %s515 = sand.u32 %s30, 1
        %s516 = scalar_lea.sflag [#allocation5], %s515
        %s517 = sand.u32 %s323, 1
        %s518 = smul.addr %s517, 8
        %s519 = scalar_lea.vmem [#allocation4], %s518
        %p520 = pneg %p364
        %p521 = pneg %p361
        %s522 = sand.u32 %s30, 1
        %s523 = scalar_lea.sflag [#allocation5], %s522
        %s524 = sand.u32 %s351, 1
        %s525 = smul.addr %s524, 8
        %s526 = scalar_lea.vmem [#allocation6], %s525
        %p527 = scmp.lt.s32.totalorder %s34, 1
        %s528 = scalar_select %p527, %s34, 1
        %p529 = scmp.lt.s32.totalorder %s35, 0
        %s530 = scalar_select %p529, %s35, 0
        %s531 = sadd.s32 %s530, %s528
        %s532 = smul.addr %s531, 8
        %s533 = scalar_lea.vmem %s0, %s532
        %p534 = scmp.lt.s32.totalorder %s34, 1
        %s535 = scalar_select %p534, %s34, 1
        %p536 = scmp.lt.s32.totalorder %s35, 0
        %s537 = scalar_select %p536, %s35, 0
        %s538 = sadd.s32 %s537, %s535
        %s539 = smul.addr %s538, 8
        %s540 = scalar_lea.vmem %s1, %s539
        %p541 = scmp.lt.s32.totalorder %s34, 1
        %s542 = scalar_select %p541, %s34, 1
        %p543 = scmp.lt.s32.totalorder %s35, 0
        %s544 = scalar_select %p543, %s35, 0
        %s545 = sadd.s32 %s544, %s542
        %s546 = smul.addr %s545, 8
        %s547 = scalar_lea.vmem %s2, %s546
        %p548 = scmp.lt.s32.totalorder %s34, 1
        %s549 = scalar_select %p548, %s34, 1
        %p550 = scmp.lt.s32.totalorder %s35, 0
        %s551 = scalar_select %p550, %s35, 0
        %s552 = sadd.s32 %s551, %s549
        %s553 = smul.addr %s552, 8
        %s554 = scalar_lea.vmem %s3, %s553
        %p555 = scmp.lt.s32.totalorder %s34, 1
        %s556 = scalar_select %p555, %s34, 1
        %s557 = smul.addr %s556, 2
        %s558 = smul.addr %s557, 8
        %s559 = scalar_lea.vmem %s4, %s558
        %v561 = vld [vmem:[%s533] sm:$0xff]
        %v562 = vpack.c.bf16 %v561, %v561
        %v563 = vld [vmem:[%s5] sm:$0xf]
        %v564 = vld [vmem:[%s5 + $0x4] sm:$0xf]
        %v565 = vld [vmem:[%s5 + $0x8] sm:$0xf]
        %v566 = vld [vmem:[%s5 + $0xc] sm:$0xf]
        %v567 = vld [vmem:[%s5 + $0x10] sm:$0xf]
        %v568 = vld [vmem:[%s5 + $0x14] sm:$0xf]
        %v569 = vld [vmem:[%s5 + $0x18] sm:$0xf]
        %v570 = vld [vmem:[%s5 + $0x1c] sm:$0xf]
        %v571 = vld [vmem:[%s6] sm:$0x1]
        %v573 = vlaneseq
        %v574 = vshrl.u32 %v573, 7
        %v575 = vsub.s32 0, %v574
        %v576 = vrot.slane %v571, %v575
        %v586 = vunpack.c.l.b16 %v563
        %v587 = vunpack.c.l.b16 %v564
        %v588 = vunpack.c.l.b16 %v565
        %v589 = vunpack.c.l.b16 %v566
        %v590 = vunpack.c.l.b16 %v567
        %v591 = vunpack.c.l.b16 %v568
        %v592 = vunpack.c.l.b16 %v569
        %v593 = vunpack.c.l.b16 %v570
        %v594 = vpack.c.b16 %v587, %v586
        %v595 = vpack.c.b16 %v589, %v588
        %v596 = vpack.c.b16 %v591, %v590
        %v597 = vpack.c.b16 %v593, %v592
        %vm602 = vcmask 523264
        %v604 = vsel %vm602, %v562, 0
        %606 = vmatprep.subr.bf16.mxu0 0
        %607 = vmatpush1.bf16.msra.mxu0 %v594
        %608 = vmatprep.subr.bf16.mxu0 0
        %609 = vmatpush1.bf16.msra.mxu0 %v595
        %610 = vmatprep.subr.bf16.mxu0 0
        %611 = vmatpush1.bf16.msra.mxu0 %v596
        %612 = vmatprep.subr.bf16.mxu0 0
        %613 = vmatpush1.bf16.msra.mxu0 %v597
        %614 = vmatprep.subr.bf16.mxu0 0
        %615 = vmatpush1.bf16.msra.mxu0 0
        %616 = vmatprep.subr.bf16.mxu0 0
        %617 = vmatpush1.bf16.msra.mxu0 0
        %618 = vmatprep.subr.bf16.mxu0 0
        %619 = vmatpush1.bf16.msra.mxu0 0
        %620 = vmatprep.subr.bf16.mxu0 0
        %621 = vmatpush1.bf16.msra.mxu0 0
        %622 = vmatprep.subr.bf16.mxu0 0
        %623 = vmatpush1.bf16.msra.mxu0 0
        %624 = vmatprep.subr.bf16.mxu0 0
        %625 = vmatpush1.bf16.msra.mxu0 0
        %626 = vmatprep.subr.bf16.mxu0 0
        %627 = vmatpush1.bf16.msra.mxu0 0
        %628 = vmatprep.subr.bf16.mxu0 0
        %629 = vmatpush1.bf16.msra.mxu0 0
        %630 = vmatprep.subr.bf16.mxu0 0
        %631 = vmatpush1.bf16.msra.mxu0 0
        %632 = vmatprep.subr.bf16.mxu0 0
        %633 = vmatpush1.bf16.msra.mxu0 0
        %634 = vmatprep.subr.bf16.mxu0 0
        %635 = vmatpush1.bf16.msra.mxu0 0
        %636 = vmatprep.subr.bf16.mxu0 0
        %637 = vmatpush1.bf16.msra.mxu0 0
        %638 = vmatprep.mubr.bf16.mxu0 0
        %639 = vmatmul.mubr.bf16.gmra.mrb[0].mxu0 %v604
        %v640 = vpop.f32.mrb[0].mxu0
        %v641 = vadd.f32 %v576, %v640
        %v642 = vpop.f32.mrb[0].mxu0
        %v643 = vpop.f32.mrb[0].mxu0
        %v644 = vpop.f32.mrb[0].mxu0
        %645 = vdwg.mxu0
        %vm646 = vcmask 261120
        %v647 = vsel %vm646, %v641, -inf
        %648 = vmax.xlane.f32.xlu0 %v647
        %v649 = vpop.xlane.xlu0 %648
        %v650 = vsub.f32 %v641, %v649
        %v651 = vmul.f32 %v650, 1.442695
        %v652 = vpow.pop %v651
        %v653 = vsel %vm646, %v652, 0.0
        %654 = vadd.xlane.f32.xlu0 %v653
        %v655 = vpop.xlane.xlu0 %654
        %v656 = vrcp.pop %v655
        %v657 = vmul.f32 %v652, %v656
        %658 = vst.msk [vmem:[%s512] sm:$0xff] %vm646, %v657
        %v659 = vld [vmem:[%s7] sm:$0xf]
        %v660 = vld [vmem:[%s7 + $0x4] sm:$0xf]
        %v661 = vld [vmem:[%s7 + $0x8] sm:$0xf]
        %v662 = vld [vmem:[%s7 + $0xc] sm:$0xf]
        %v663 = vld [vmem:[%s7 + $0x10] sm:$0xf]
        %v664 = vld [vmem:[%s7 + $0x14] sm:$0xf]
        %v665 = vld [vmem:[%s7 + $0x18] sm:$0xf]
        %v666 = vld [vmem:[%s7 + $0x1c] sm:$0xf]
        %v675 = vunpack.c.l.b16 %v659
        %v676 = vunpack.c.l.b16 %v660
        %v677 = vunpack.c.l.b16 %v661
        %v678 = vunpack.c.l.b16 %v662
        %v679 = vunpack.c.l.b16 %v663
        %v680 = vunpack.c.l.b16 %v664
        %v681 = vunpack.c.l.b16 %v665
        %v682 = vunpack.c.l.b16 %v666
        %v683 = vpack.c.b16 %v676, %v675
        %v684 = vpack.c.b16 %v678, %v677
        %v685 = vpack.c.b16 %v680, %v679
        %v686 = vpack.c.b16 %v682, %v681
        %691 = vmatprep.subr.bf16.mxu0 0
        %692 = vmatpush1.bf16.msra.mxu0 %v683
        %693 = vmatprep.subr.bf16.mxu0 0
        %694 = vmatpush1.bf16.msra.mxu0 %v684
        %695 = vmatprep.subr.bf16.mxu0 0
        %696 = vmatpush1.bf16.msra.mxu0 %v685
        %697 = vmatprep.subr.bf16.mxu0 0
        %698 = vmatpush1.bf16.msra.mxu0 %v686
        %699 = vmatprep.subr.bf16.mxu0 0
        %700 = vmatpush1.bf16.msra.mxu0 0
        %701 = vmatprep.subr.bf16.mxu0 0
        %702 = vmatpush1.bf16.msra.mxu0 0
        %703 = vmatprep.subr.bf16.mxu0 0
        %704 = vmatpush1.bf16.msra.mxu0 0
        %705 = vmatprep.subr.bf16.mxu0 0
        %706 = vmatpush1.bf16.msra.mxu0 0
        %707 = vmatprep.subr.bf16.mxu0 0
        %708 = vmatpush1.bf16.msra.mxu0 0
        %709 = vmatprep.subr.bf16.mxu0 0
        %710 = vmatpush1.bf16.msra.mxu0 0
        %711 = vmatprep.subr.bf16.mxu0 0
        %712 = vmatpush1.bf16.msra.mxu0 0
        %713 = vmatprep.subr.bf16.mxu0 0
        %714 = vmatpush1.bf16.msra.mxu0 0
        %715 = vmatprep.subr.bf16.mxu0 0
        %716 = vmatpush1.bf16.msra.mxu0 0
        %717 = vmatprep.subr.bf16.mxu0 0
        %718 = vmatpush1.bf16.msra.mxu0 0
        %719 = vmatprep.subr.bf16.mxu0 0
        %720 = vmatpush1.bf16.msra.mxu0 0
        %721 = vmatprep.subr.bf16.mxu0 0
        %722 = vmatpush1.bf16.msra.mxu0 0
        %723 = vmatprep.mubr.bf16.mxu0 0
        %724 = vmatmul.mubr.bf16.gmra.mrb[0].mxu0 %v604
        %v725 = vpop.f32.mrb[0].mxu0
        %v726 = vadd.f32 0.0, %v725
        %v727 = vpop.f32.mrb[0].mxu0
        %v728 = vpop.f32.mrb[0].mxu0
        %v729 = vpop.f32.mrb[0].mxu0
        %730 = vdwg.mxu0
        %v731 = vtanh.pop %v726
        %v732 = vmul.f32 %v731, 1.442695
        %v733 = vpow.pop %v732
        %v734 = vld [vmem:[%s540] sm:$0xff]
        %736 = vrot.lane.b32.xlu0 %v734, 8
        %v737 = vpop.permute.xlu0 %736
        %v739 = vmul.f32 %v733, %v737
        %741 = vrot.lane.b32.xlu0 %v739, 120
        %v742 = vpop.permute.xlu0 %741
        %v744 = vadd.f32 %v731, %v742
        %v745 = vld [vmem:[%s8] sm:$0xff]
        %v746 = vld [vmem:[%s9] sm:$0x1]
        %v748 = vlaneseq
        %v749 = vshrl.u32 %v748, 7
        %v750 = vsub.s32 0, %v749
        %v751 = vrot.slane %v746, %v750
        %vm753 = vcmask 64512
        %v755 = vsel %vm753, %v744, 0
        %757 = vmatprep.subr.mxu0 0.0
        %758 = vmatpush1.msra.mxu0 %v745
        %759 = vmatprep.subr.mxu0 0.0
        %760 = vmatpush1.msra.mxu0 0.0
        %761 = vmatprep.subr.mxu0 0.0
        %762 = vmatpush1.msra.mxu0 0.0
        %763 = vmatprep.subr.mxu0 0.0
        %764 = vmatpush1.msra.mxu0 0.0
        %765 = vmatprep.subr.mxu0 0.0
        %766 = vmatpush1.msra.mxu0 0.0
        %767 = vmatprep.subr.mxu0 0.0
        %768 = vmatpush1.msra.mxu0 0.0
        %769 = vmatprep.subr.mxu0 0.0
        %770 = vmatpush1.msra.mxu0 0.0
        %771 = vmatprep.subr.mxu0 0.0
        %772 = vmatpush1.msra.mxu0 0.0
        %773 = vmatprep.subr.mxu0 0.0
        %774 = vmatpush1.msra.mxu0 0.0
        %775 = vmatprep.subr.mxu0 0.0
        %776 = vmatpush1.msra.mxu0 0.0
        %777 = vmatprep.subr.mxu0 0.0
        %778 = vmatpush1.msra.mxu0 0.0
        %779 = vmatprep.subr.mxu0 0.0
        %780 = vmatpush1.msra.mxu0 0.0
        %781 = vmatprep.subr.mxu0 0.0
        %782 = vmatpush1.msra.mxu0 0.0
        %783 = vmatprep.subr.mxu0 0.0
        %784 = vmatpush1.msra.mxu0 0.0
        %785 = vmatprep.subr.mxu0 0.0
        %786 = vmatpush1.msra.mxu0 0.0
        %787 = vmatprep.subr.mxu0 0.0
        %788 = vmatpush1.msra.mxu0 0.0
        %789 = vmatprep.subr.mxu0 0.0
        %790 = vmatpush1.msra.mxu0 0.0
        %791 = vmatprep.subr.mxu0 0.0
        %792 = vmatpush1.msra.mxu0 0.0
        %793 = vmatprep.subr.mxu0 0.0
        %794 = vmatpush1.msra.mxu0 0.0
        %795 = vmatprep.subr.mxu0 0.0
        %796 = vmatpush1.msra.mxu0 0.0
        %797 = vmatprep.subr.mxu0 0.0
        %798 = vmatpush1.msra.mxu0 0.0
        %799 = vmatprep.subr.mxu0 0.0
        %800 = vmatpush1.msra.mxu0 0.0
        %801 = vmatprep.subr.mxu0 0.0
        %802 = vmatpush1.msra.mxu0 0.0
        %803 = vmatprep.subr.mxu0 0.0
        %804 = vmatpush1.msra.mxu0 0.0
        %805 = vmatprep.subr.mxu0 0.0
        %806 = vmatpush1.msra.mxu0 0.0
        %807 = vmatprep.subr.mxu0 0.0
        %808 = vmatpush1.msra.mxu0 0.0
        %809 = vmatprep.subr.mxu0 0.0
        %810 = vmatpush1.msra.mxu0 0.0
        %811 = vmatprep.subr.mxu0 0.0
        %812 = vmatpush1.msra.mxu0 0.0
        %813 = vmatprep.subr.mxu0 0.0
        %814 = vmatpush1.msra.mxu0 0.0
        %815 = vmatprep.subr.mxu0 0.0
        %816 = vmatpush1.msra.mxu0 0.0
        %817 = vmatprep.subr.mxu0 0.0
        %818 = vmatpush1.msra.mxu0 0.0
        %819 = vmatprep.subr.mxu0 0.0
        %820 = vmatpush1.msra.mxu0 0.0
        %821 = vmatprep.mubr.f32.mxu0 0.0
        %822 = vmatmul.mubr.f32.gmra.mrb[0].mxu0 %v755
        %v823 = vpop.f32.mrb[0].mxu0
        %v824 = vadd.f32 %v751, %v823
        %v825 = vpop.f32.mrb[0].mxu0
        %826 = vdwg.mxu0
        %v827 = vld [vmem:[%s547] sm:$0xff]
        %v828 = vadd.f32 %v827, %v824
        %vm829 = vcmask 23552
        %v830 = vsel %vm829, %v828, -inf
        %831 = vmax.xlane.f32.xlu0 %v830
        %v832 = vpop.xlane.xlu0 %831
        %v833 = vsub.f32 %v828, %v832
        %v834 = vmul.f32 %v833, 1.442695
        %v835 = vpow.pop %v834
        %v836 = vsel %vm829, %v835, 0.0
        %837 = vadd.xlane.f32.xlu0 %v836
        %v838 = vpop.xlane.xlu0 %837
        %v839 = vrcp.pop %v838
        %v840 = vmul.f32 %v835, %v839
        %841 = vst.msk [vmem:[%s526] sm:$0xff] %vm753, %v744
        %843 = vrot.lane.b32.xlu0 %v731, 8
        %v844 = vpop.permute.xlu0 %843
        %vm846 = vcmask 130112
        %847 = vst.msk [vmem:[%s526] sm:$0xff] %vm846, %v844
        %849 = vrot.lane.b32.xlu0 %v733, 8
        %v850 = vpop.permute.xlu0 %849
        %vm852 = vcmask 195712
        %853 = vst.msk [vmem:[%s526] sm:$0xff] %vm852, %v850
        %855 = vrot.lane.b32.xlu0 %v840, 24
        %v856 = vpop.permute.xlu0 %855
        %vm858 = vcmask 220352
        %859 = vst.msk [vmem:[%s526] sm:$0xff] %vm858, %v856
        %v860 = vld [vmem:[%s554] sm:$0xff]
        %v861 = vld [vmem:[%s559] sm:$0xff]
        %v862 = vld [vmem:[%s559 + $0x8] sm:$0xff]
        %v863 = vlaneseq
        %v864 = vand.u32 %v863, 127
        %vm865 = vcmp.lt.s32.totalorder %v864, 8
        %866 = vset.pattern.permute.xlu0 0
        %867 = vperm.xlu0 %866, %v840
        %v868 = vpop.permute.xlu0 %867
        %870 = vset.pattern.permute.xlu0 1
        %871 = vperm.xlu0 %870, %v840
        %v872 = vpop.permute.xlu0 %871
        %v874 = vsel %vm865, %v868, %v872
        %v875 = vmul.f32 %v860, %v874
        %v876 = vpack.c.bf16 %v875, %v875
        %877 = vset.pattern.permute.xlu0 0
        %878 = vperm.xlu0 %877, %v861
        %v879 = vpop.permute.xlu0 %878
        %880 = vset.pattern.permute.xlu0 0
        %881 = vperm.xlu0 %880, %v862
        %v882 = vpop.permute.xlu0 %881
        %vm883 = vcmp.eq.s32.totalorder %v879, %v864
        %vm884 = vcmp.eq.s32.totalorder %v882, %v864
        %v885 = vsel %vm883, 1, 0
        %v886 = vsel %vm884, 1, 0
        %v887 = vcvt.s32.f32 %v885
        %v888 = vcvt.s32.f32 %v886
        %v889 = vpack.c.bf16 %v888, %v887
        %890 = vset.pattern.permute.xlu0 2
        %891 = vperm.xlu0 %890, %v840
        %v892 = vpop.permute.xlu0 %891
        %v894 = vmul.f32 %v892, %v657
        %vm895 = vcmask 130048
        %v897 = vsel %vm895, %v876, 0
        %899 = vmatprep.subr.bf16.mxu0 0
        %900 = vmatpush1.bf16.msra.mxu0 %v889
        %901 = vmatprep.subr.bf16.mxu0 0
        %902 = vmatpush1.bf16.msra.mxu0 0
        %903 = vmatprep.subr.bf16.mxu0 0
        %904 = vmatpush1.bf16.msra.mxu0 0
        %905 = vmatprep.subr.bf16.mxu0 0
        %906 = vmatpush1.bf16.msra.mxu0 0
        %907 = vmatprep.subr.bf16.mxu0 0
        %908 = vmatpush1.bf16.msra.mxu0 0
        %909 = vmatprep.subr.bf16.mxu0 0
        %910 = vmatpush1.bf16.msra.mxu0 0
        %911 = vmatprep.subr.bf16.mxu0 0
        %912 = vmatpush1.bf16.msra.mxu0 0
        %913 = vmatprep.subr.bf16.mxu0 0
        %914 = vmatpush1.bf16.msra.mxu0 0
        %915 = vmatprep.subr.bf16.mxu0 0
        %916 = vmatpush1.bf16.msra.mxu0 0
        %917 = vmatprep.subr.bf16.mxu0 0
        %918 = vmatpush1.bf16.msra.mxu0 0
        %919 = vmatprep.subr.bf16.mxu0 0
        %920 = vmatpush1.bf16.msra.mxu0 0
        %921 = vmatprep.subr.bf16.mxu0 0
        %922 = vmatpush1.bf16.msra.mxu0 0
        %923 = vmatprep.subr.bf16.mxu0 0
        %924 = vmatpush1.bf16.msra.mxu0 0
        %925 = vmatprep.subr.bf16.mxu0 0
        %926 = vmatpush1.bf16.msra.mxu0 0
        %927 = vmatprep.subr.bf16.mxu0 0
        %928 = vmatpush1.bf16.msra.mxu0 0
        %929 = vmatprep.subr.bf16.mxu0 0
        %930 = vmatpush1.bf16.msra.mxu0 0
        %931 = vmatprep.mubr.bf16.mxu0 0
        %932 = vmatmul.mubr.bf16.gmra.mrb[0].mxu0 %v897
        %v933 = vpop.f32.mrb[0].mxu0
        %v934 = vadd.f32 %v894, %v933
        %v935 = vpop.f32.mrb[0].mxu0
        %v936 = vpop.f32.mrb[0].mxu0
        %v937 = vpop.f32.mrb[0].mxu0
        %938 = vdwg.mxu0
        %939 = vst.msk [vmem:[%s519] sm:$0xff] %vm646, %v934
        %s940 = sand.u32 %s295, 1
        %s941 = scalar_lea.sflag [#allocation3], %s940
        %s942 = sand.u32 %s295, 1
        %s943 = smul.addr %s942, 8
        %s944 = scalar_lea.vmem [#allocation2], %s943
        %s945 = sand.u32 %s30, 1
        %s946 = scalar_lea.sflag [#allocation5], %s945
        %s947 = sand.u32 %s323, 1
        %s948 = smul.addr %s947, 8
        %s949 = scalar_lea.vmem [#allocation4], %s948
        %s950 = sand.u32 %s30, 1
        %s951 = scalar_lea.sflag [#allocation5], %s950
        %s952 = sand.u32 %s351, 1
        %s953 = smul.addr %s952, 8
        %s954 = scalar_lea.vmem [#allocation6], %s953
        // Predicated region
        $region61: #{tpu_custom_call.1} parent=59 // pred_check
          %p955 = pneg %p305
        $region62: #{tpu_custom_call.1} parent=59 // pred_check_branch
          %957 = sbr.rel (%p955) target = $region64
        $region63: #{tpu_custom_call.1} parent=59 // pred_region
          %s959 = ssub.s32 128, 128
          %960 = vsyncadd %s941, %s959
          %s961 = sadd.s32 %s35, %s34
          %s962 = smul.addr %s961, 128
          %s963 = scalar_lea.hbm %s10, %s962
          %s965 = sshll.u32 %s944, 4
          %s966 = int_to_ptr.vmem [resolvable:$true] %s965
          %968 = dma.vmem_to_hbm [thread:$0]  %s966, 128, %s963, %s941
        $region64: #{tpu_custom_call.1} parent=59 // pred_fallthru
          _
        // Predicated region
        $region65: #{tpu_custom_call.1} parent=59 // pred_check
          %p969 = pneg %p333
        $region66: #{tpu_custom_call.1} parent=59 // pred_check_branch
          %971 = sbr.rel (%p969) target = $region68
        $region67: #{tpu_custom_call.1} parent=59 // pred_region
          %s973 = ssub.s32 128, 128
          %974 = vsyncadd %s946, %s973
          %s975 = sadd.s32 %s35, %s34
          %s976 = smul.addr %s975, 128
          %s977 = scalar_lea.hbm %s11, %s976
          %s979 = sshll.u32 %s949, 4
          %s980 = int_to_ptr.vmem [resolvable:$true] %s979
          %982 = dma.vmem_to_hbm [thread:$0]  %s980, 128, %s977, %s946
        $region68: #{tpu_custom_call.1} parent=59 // pred_fallthru
          _
        // Predicated region
        $region69: #{tpu_custom_call.1} parent=59 // pred_check
          %p983 = pneg %p361
        $region70: #{tpu_custom_call.1} parent=59 // pred_check_branch
          %985 = sbr.rel (%p983) target = $region72
        $region71: #{tpu_custom_call.1} parent=59 // pred_region
          %s987 = ssub.s32 128, 128
          %988 = vsyncadd %s951, %s987
          %s989 = sadd.s32 %s35, %s34
          %s990 = smul.addr %s989, 128
          %s991 = scalar_lea.hbm %s12, %s990
          %s993 = sshll.u32 %s954, 4
          %s994 = int_to_ptr.vmem [resolvable:$true] %s993
          %996 = dma.vmem_to_hbm [thread:$0]  %s994, 128, %s991, %s951
        $region72: #{tpu_custom_call.1} parent=59 // pred_fallthru
          _
      $region60: #{tpu_custom_call.1} parent=5 // pred_fallthru
        _
      %p997 = scmp.le.s32.totalorder 2, %s25
      // Predicated region
      $region73: #{tpu_custom_call.1} parent=5 // pred_check
        %p998 = pneg %p997
      $region74: #{tpu_custom_call.1} parent=5 // pred_check_branch
        %1000 = sbr.rel (%p998) target = $region76
      $region75: #{tpu_custom_call.1} parent=5 // pred_region
        %s1001 = ssub.s32 %s25, 2
        // Predicated region
        $region77: #{tpu_custom_call.1} parent=75 // pred_check
          %p1002 = pneg %p311
        $region78: #{tpu_custom_call.1} parent=75 // pred_check_branch
          %1004 = sbr.rel (%p1002) target = $region80
        $region79: #{tpu_custom_call.1} parent=75 // pred_region
          %s1005 = sand.u32 %s296, 1
          %s1006 = scalar_lea.sflag [#allocation3], %s1005
          %s1007 = sand.u32 %s296, 1
          %s1008 = smul.addr %s1007, 8
          %s1009 = scalar_lea.vmem [#allocation2], %s1008
          %1010 = dma.done %s1006, 128
        $region80: #{tpu_custom_call.1} parent=75 // pred_fallthru
          _
        // Predicated region
        $region81: #{tpu_custom_call.1} parent=75 // pred_check
          %p1011 = pneg %p339
        $region82: #{tpu_custom_call.1} parent=75 // pred_check_branch
          %1013 = sbr.rel (%p1011) target = $region84
        $region83: #{tpu_custom_call.1} parent=75 // pred_region
          %s1014 = sand.u32 %s31, 1
          %s1015 = scalar_lea.sflag [#allocation5], %s1014
          %s1016 = sand.u32 %s324, 1
          %s1017 = smul.addr %s1016, 8
          %s1018 = scalar_lea.vmem [#allocation4], %s1017
          %1019 = dma.done %s1015, 128
        $region84: #{tpu_custom_call.1} parent=75 // pred_fallthru
          _
        // Predicated region
        $region85: #{tpu_custom_call.1} parent=75 // pred_check
          %p1020 = pneg %p367
        $region86: #{tpu_custom_call.1} parent=75 // pred_check_branch
          %1022 = sbr.rel (%p1020) target = $region88
        $region87: #{tpu_custom_call.1} parent=75 // pred_region
          %s1023 = sand.u32 %s31, 1
          %s1024 = scalar_lea.sflag [#allocation5], %s1023
          %s1025 = sand.u32 %s352, 1
          %s1026 = smul.addr %s1025, 8
          %s1027 = scalar_lea.vmem [#allocation6], %s1026
          %1028 = dma.done %s1024, 128
        $region88: #{tpu_custom_call.1} parent=75 // pred_fallthru
          _
      $region76: #{tpu_custom_call.1} parent=5 // pred_fallthru
        _
    $region6: #{tpu_custom_call.1} parent=1 // loop_footer
      %s29 = sadd.s32 1, %s25
    $region7: #{tpu_custom_call.1} parent=1 // loop_footer_branch
      %24 = sbr.rel target = $region3
    $region8: #{tpu_custom_call.1} parent=1 // loop_exit
      _
    %1029 = vsyncpa [#allocation3], 1
    %s1030 = scalar_lea.sflag [#allocation3], 1
    %1031 = vsyncpa %s1030, 1
    %1032 = vsyncpa [#allocation5], 1
    %s1033 = scalar_lea.sflag [#allocation5], 1
    %1034 = vsyncpa %s1033, 1

</llo_original>
